<compile_context>
chip_gen: v5e
topology: v5e:2x2
jax: 0.10.0
libtpu: 0.0.40
codegen_flags: <defaults>
</compile_context>

<pallas_src>
import math

import jax
import jax.numpy as jnp
from jax.experimental import pallas as pl
from jax.experimental.pallas import tpu as pltpu

_NPARAMS = 4
_PER_ROW = 128 // _NPARAMS  # 32 logical batch rows packed per 128-lane row


def _expand_kernel(p_ref, o_ref):
    # p_ref: (1, 128) lane-dense param row (params tiled 32x along lanes).
    # o_ref: (TB, 128) output tile.  Single sublane broadcast of the row
    # across the tile; one VPU op + unmasked full-lane stores.
    o_ref[...] = jnp.broadcast_to(p_ref[...], o_ref.shape)


def fixed_varyer_forward(x: jax.Array, params: jax.Array) -> jax.Array:
    """JAX/Pallas equivalent of FixedVaryer.forward.

    x:      any array whose leading dim is the batch size (values unused).
    params: shape (4,) -> returns (batch, 4) float32.
    """
    batch = x.shape[0]
    p = params.reshape(-1).astype(jnp.float32)  # (4,)

    # Build the lane-dense (1, 128) param row ONCE in the wrapper (XLA fuses
    # this trivially) instead of re-tiling it inside every grid step.
    p_row = jnp.tile(p, _PER_ROW).reshape(1, 128)

    # Number of 128-lane output rows needed to cover `batch` logical rows.
    rows = pl.cdiv(batch, _PER_ROW)
    # Sublane tile: multiple of 8, capped so each output tile is at most
    # 512 * 128 * 4 B = 256 KiB (double-buffered -> 512 KiB), far under the
    # scoped-VMEM default on every chip (v5e 16 MiB, v6e/v7x 32 MiB).
    tb = min(512, pl.cdiv(rows, 8) * 8)
    grid = (pl.cdiv(rows, tb),)

    out = pl.pallas_call(
        _expand_kernel,
        out_shape=jax.ShapeDtypeStruct((rows, 128), jnp.float32),
        grid=grid,
        in_specs=[pl.BlockSpec((1, 128), lambda i: (0, 0))],
        out_specs=pl.BlockSpec((tb, 128), lambda i: (i, 0)),
        compiler_params=pltpu.CompilerParams(
            dimension_semantics=("parallel",),  # shards tiles across v7x's 2 TCs
        ),
    )(p_row)

    # Contiguous row-major reshape (free) back to (rows*32, 4), then clip the
    # padded tail rows off the leading dim.
    return out.reshape(rows * _PER_ROW, _NPARAMS)[:batch]


if __name__ == "__main__":
    key = jax.random.PRNGKey(0)
    kx, _ = jax.random.split(key)

    # Small deterministic inputs consistent with the module:
    # x only contributes its batch dimension.
    x = jax.random.normal(kx, (2, 4, 16, 16), dtype=jnp.float32)

    # Deterministic "learnable" params [raw_omega, delta, raw_phi, raw_time].
    # FixedVaryer.forward applies NO transform; it expands them verbatim.
    params = jnp.array([1.0, -0.5, math.pi / 4.0, 2.0], dtype=jnp.float32)

    out = fixed_varyer_forward(x, params)
    out = jax.block_until_ready(out)

    # Reference check: expand params to (batch, 4).
    ref = jnp.broadcast_to(params[None, :], (x.shape[0], 4))
    assert out.shape == (x.shape[0], 4), out.shape
    assert out.dtype == jnp.float32, out.dtype
    assert jnp.allclose(out, ref), (out, ref)

    print("KERNEL_OK")
</pallas_src>

<mosaic_0001>
module attributes {stable_mosaic.version = 11 : i64} {
  func.func @_expand_kernel(%arg0: i32, %arg1: memref<1x128xf32, #tpu.memory_space<vmem>>, %arg2: memref<8x128xf32, #tpu.memory_space<vmem>>) attributes {dimension_semantics = [#tpu.dimension_semantics<parallel>], iteration_bounds = array<i64: 1>, scalar_prefetch = 0 : i64, scratch_operands = 0 : i64, tpu.core_type = #tpu.core_type<tc>, window_params = [{pipeline_mode = #tpu.pipeline_mode<synchronous>, transform_indices = @transform_0, window_bounds = array<i64: 1, 128>}, {transform_indices = @transform_1, window_bounds = array<i64: 8, 128>}]} {
    %c0 = arith.constant 0 : index
    %c0_0 = arith.constant 0 : index
    %0 = vector.load %arg1[%c0, %c0_0] : memref<1x128xf32, #tpu.memory_space<vmem>>, vector<1x128xf32>
    %1 = vector.shape_cast %0 : vector<1x128xf32> to vector<1x128xf32>
    %2 = vector.broadcast %1 : vector<1x128xf32> to vector<8x128xf32>
    %c0_1 = arith.constant 0 : index
    %c0_2 = arith.constant 0 : index
    %3 = vector.load %arg2[%c0_1, %c0_2] : memref<8x128xf32, #tpu.memory_space<vmem>>, vector<8x128xf32>
    tpu.vector_store %arg2[%c0_1, %c0_2], %2 {strides = array<i32>} : memref<8x128xf32, #tpu.memory_space<vmem>>, vector<8x128xf32>,
    return
  }
  func.func @transform_0(%arg0: i32) -> (i32, i32) {
    %c0_i32 = arith.constant 0 : i32
    %c0_i32_0 = arith.constant 0 : i32
    %c0_i32_1 = arith.constant 0 : i32
    return %c0_i32, %c0_i32_0 : i32, i32
  }
  func.func @transform_1(%arg0: i32) -> (i32, i32) {
    %c0_i32 = arith.constant 0 : i32
    %c0_i32_0 = arith.constant 0 : i32
    return %arg0, %c0_i32 : i32, i32
  }
}

</mosaic_0001>

<llo_original>
// kernel: tpu_custom_call.1
$region0: #{tpu_custom_call.1}
  #allocation0 [shape = 'u32[]', space=smem, size = 0x4, offset = 0x4, fixed_abs, tag = 'smem constant byte address 0x4 - core index']
  #allocation1 [shape = 'u32[72,128]{1,0:T(1,128)}', space=vmem, size = 0x9000, scoped, tag = 'internal scratch']
  %s0 = inlined_call_operand.hbm [shape: f32[1,128], index: 0, kind: input, shape index: {}]
  %s1 = inlined_call_operand.hbm [shape: f32[1,128], index: 1, kind: output, shape index: {}]
  %s2 = sld [smem:[#allocation0]]
  $region18: #{tpu_custom_call.1} parent=0
    _
  %s4 = ssub.s32 1, %s2
  %s5 = scalar_select 0, %s4, %s2
  $region1: #{tpu_custom_call.1} parent=0
    #allocation2 [shape = 'u8[512]{0}', space=vmem, size = 0x400, scoped, tag = 'input window, operand 0, single buffered']
    #allocation3 [shape = 's32[1]{0}', space=sflag, size = 0x4, scoped, tag = 'scoped memory for tpu_custom_call.1']
    #allocation4 [shape = 's32[1]{0}', space=sflag, size = 0x4, scoped, tag = 'scoped memory for tpu_custom_call.1']
    #allocation5 [shape = 'u8[4096]{0}', space=vmem, size = 0x1000, scoped, tag = 'output window, operand 0, single buffered']
    %6 = vsyncpa [#allocation3], 0
    %7 = vsyncpa [#allocation4], 0
    // Predicated region
    $region2: #{tpu_custom_call.1} parent=1 // pred_check
      _
    $region3: #{tpu_custom_call.1} parent=1 // pred_check_branch
      %9 = sbr.rel (0) target = $region5
    $region4: #{tpu_custom_call.1} parent=1 // pred_region
      %11 = vsyncadd [#allocation3], 0
      %s13 = sshll.u32 %s0, 4
      %s14 = int_to_ptr.hbm [resolvable:$true] %s13
      %s15 = sshll.u32 [#allocation2], 4
      %s16 = int_to_ptr.vmem [resolvable:$true] %s15
      %18 = dma.hbm_to_vmem [thread:$0]  %s14, 16, %s16, [#allocation3]
    $region5: #{tpu_custom_call.1} parent=1 // pred_fallthru
      _
    // Predicated region
    $region6: #{tpu_custom_call.1} parent=1 // pred_check
      _
    $region7: #{tpu_custom_call.1} parent=1 // pred_check_branch
      %20 = sbr.rel (0) target = $region9
    $region8: #{tpu_custom_call.1} parent=1 // pred_region
      %22 = dma.done [#allocation3], 16
    $region9: #{tpu_custom_call.1} parent=1 // pred_fallthru
      _
    %v23 = vld [vmem:[#allocation2] sm:$0x1]
    %v25 = vperm.slane %v23, 0
    %27 = vst [vmem:[#allocation5] sm:$0xff] %v25
    // Predicated region
    $region10: #{tpu_custom_call.1} parent=1 // pred_check
      _
    $region11: #{tpu_custom_call.1} parent=1 // pred_check_branch
      %29 = sbr.rel (0) target = $region13
    $region12: #{tpu_custom_call.1} parent=1 // pred_region
      %31 = vsyncadd [#allocation4], 112
      %s32 = sshll.u32 [#allocation5], 4
      %s33 = int_to_ptr.vmem [resolvable:$true] %s32
      %s34 = sshll.u32 %s1, 4
      %s35 = int_to_ptr.hbm [resolvable:$true] %s34
      %40 = dma.vmem_to_hbm [thread:$0]  %s33, 16, %s35, [#allocation4], 16, 16, 1
    $region13: #{tpu_custom_call.1} parent=1 // pred_fallthru
      _
    // Predicated region
    $region14: #{tpu_custom_call.1} parent=1 // pred_check
      _
    $region15: #{tpu_custom_call.1} parent=1 // pred_check_branch
      %42 = sbr.rel (0) target = $region17
    $region16: #{tpu_custom_call.1} parent=1 // pred_region
      %44 = dma.done [#allocation4], 128
    $region17: #{tpu_custom_call.1} parent=1 // pred_fallthru
      _
    %45 = vsyncpa [#allocation3], 1
    %46 = vsyncpa [#allocation4], 1

</llo_original>
